<compile_context>
chip_gen: v6e
topology: v6e:2x2x1
jax: 0.10.0
libtpu: 0.0.40
codegen_flags: <defaults>
</compile_context>

<pallas_src>
import jax
import jax.numpy as jnp
from jax import lax
from jax.experimental import pallas as pl
from jax.experimental.pallas import tpu as pltpu


def _patch_embed_kernel(x_ref, w_ref, b_ref, pos_ref, o_ref):
    # x_ref:   (1, tn, K)  patch rows for one batch element (pipelined)
    # w_ref:   (K, D)      projection weight, single whole-array copy in VMEM
    # b_ref:   (1, D)      projection bias,   single whole-array copy in VMEM
    # pos_ref: (1, tn, D)  positional-embedding rows for this tile
    # o_ref:   (1, tn, D)
    x = x_ref[0]                                                     # (tn, K)
    y = jnp.dot(x, w_ref[...], preferred_element_type=jnp.float32)   # MXU, f32 acc
    y = y + b_ref[...].astype(jnp.float32)                           # (1,D) -> (tn,D)
    y = y + pos_ref[0].astype(jnp.float32)
    o_ref[0] = y.astype(o_ref.dtype)


def _extract_patches(feat, patch_size):
    """[B, C, H, W] -> [B, N, C*ph*pw] with non-overlapping (ph, pw) patches."""
    ph, pw = patch_size
    B, C, H, W = feat.shape
    gh, gw = H // ph, W // pw
    x = feat.reshape(B, C, gh, ph, gw, pw)
    x = x.transpose(0, 2, 4, 1, 3, 5)          # [B, gh, gw, C, ph, pw]
    return x.reshape(B, gh * gw, C * ph * pw)


def pos_embedding_forward(feat, w_conv, b_conv, pos_emb, patch_size, *, tn=256):
    """Fused patch-embedding conv + flatten/transpose + pos-embedding add.

    feat:    [B, C, H, W]      backbone output feature map (NCHW)
    w_conv:  [dim, C, ph, pw]  Conv2d weight (kernel_size == stride == patch_size)
    b_conv:  [dim]             Conv2d bias
    pos_emb: [1, N, dim]       positional embedding, N = (H/ph)*(W/pw)
    returns: [B, N, dim]
    """
    ph, pw = patch_size
    B, C, H, W = feat.shape
    dim = w_conv.shape[0]
    N = (H // ph) * (W // pw)
    K = C * ph * pw

    patches = _extract_patches(feat, patch_size)   # [B, N, K]
    w = w_conv.reshape(dim, K).T                   # [K, dim]  (matches (C, ph, pw) flatten order)
    b = b_conv.reshape(1, dim)                     # [1, dim]

    # Large (MXU-filling) row tile by default, clipped to the sequence length.
    tn = min(tn, N)
    assert N % tn == 0, f"N={N} must be divisible by the row tile tn={tn}"

    itemsize = jnp.dtype(feat.dtype).itemsize
    # 2x double-buffered streaming blocks (x, pos, out) + single-buffered
    # resident weights/bias + f32 accumulator, with headroom.
    vmem_bytes = (2 * (tn * K + 2 * tn * dim) * itemsize
                  + (K * dim + dim) * itemsize
                  + tn * dim * 4)
    vmem_limit = max(16 << 20, min(64 << 20, int(vmem_bytes * 1.5) + (4 << 20)))

    out = pl.pallas_call(
        _patch_embed_kernel,
        out_shape=jax.ShapeDtypeStruct((B, N, dim), feat.dtype),
        grid_spec=pltpu.PrefetchScalarGridSpec(
            num_scalar_prefetch=0,
            grid=(B, N // tn),
            in_specs=[
                # streaming patch rows (double-buffered by the pipeline)
                pl.BlockSpec((1, tn, K), lambda bi, j: (bi, j, 0)),
                # constant across the grid: one whole-array VMEM copy,
                # no per-step double buffering.
                pl.BlockSpec(memory_space=pltpu.MemorySpace.VMEM),
                pl.BlockSpec(memory_space=pltpu.MemorySpace.VMEM),
                # positional-embedding rows (vary with the sequence tile only)
                pl.BlockSpec((1, tn, dim), lambda bi, j: (0, j, 0)),
            ],
            out_specs=pl.BlockSpec((1, tn, dim), lambda bi, j: (bi, j, 0)),
        ),
        compiler_params=pltpu.CompilerParams(
            dimension_semantics=("parallel", "parallel"),
            vmem_limit_bytes=vmem_limit,
        ),
    )(patches, w, b, pos_emb)
    return out


if __name__ == "__main__":
    key = jax.random.PRNGKey(0)
    kf, kw, kb, kp = jax.random.split(key, 4)

    # Small stand-in shapes for the hybrid backbone's output feature map.
    B, C, Hf, Wf = 2, 32, 8, 8
    patch_size = (2, 2)
    dim = 128
    N = (Hf // patch_size[0]) * (Wf // patch_size[1])   # 16 patches
    K = C * patch_size[0] * patch_size[1]               # 128

    feat = jax.random.normal(kf, (B, C, Hf, Wf), jnp.float32)
    w_conv = jax.random.normal(kw, (dim, C, *patch_size), jnp.float32) * (K ** -0.5)
    b_conv = 0.01 * jax.random.normal(kb, (dim,), jnp.float32)
    # nn.Parameter(torch.zeros(1, N, dim)) in the module; small random values
    # here so the positional-add path is actually exercised.
    pos_emb = 0.02 * jax.random.normal(kp, (1, N, dim), jnp.float32)

    y = pos_embedding_forward(feat, w_conv, b_conv, pos_emb, patch_size)
    jax.block_until_ready(y)

    # Pure-JAX reference: the module's strided Conv2d + flatten/transpose + pos add.
    ref = lax.conv_general_dilated(
        feat, w_conv, window_strides=patch_size, padding="VALID",
        dimension_numbers=("NCHW", "OIHW", "NCHW"))
    ref = ref + b_conv[None, :, None, None]
    ref = ref.reshape(B, dim, N).transpose(0, 2, 1) + pos_emb

    assert y.shape == (B, N, dim)
    assert jnp.allclose(y, ref, atol=1e-4, rtol=1e-4), \
        f"mismatch vs reference (max abs diff {jnp.max(jnp.abs(y - ref))})"
    print("KERNEL_OK")
</pallas_src>

<mosaic_0001>
module attributes {stable_mosaic.version = 11 : i64} {
  func.func @_patch_embed_kernel(%arg0: i32, %arg1: i32, %arg2: memref<1x16x128xf32, #tpu.memory_space<vmem>>, %arg3: memref<128x128xf32, #tpu.memory_space<vmem>>, %arg4: memref<1x128xf32, #tpu.memory_space<vmem>>, %arg5: memref<1x16x128xf32, #tpu.memory_space<vmem>>, %arg6: memref<1x16x128xf32, #tpu.memory_space<vmem>>) attributes {dimension_semantics = [#tpu.dimension_semantics<parallel>, #tpu.dimension_semantics<parallel>], iteration_bounds = array<i64: 2, 1>, scalar_prefetch = 0 : i64, scratch_operands = 0 : i64, tpu.core_type = #tpu.core_type<tc>, window_params = [{transform_indices = @transform_0, window_bounds = array<i64: 1, 16, 128>}, {pipeline_mode = #tpu.pipeline_mode<synchronous>, transform_indices = @transform_1, window_bounds = array<i64: 128, 128>}, {pipeline_mode = #tpu.pipeline_mode<synchronous>, transform_indices = @transform_2, window_bounds = array<i64: 1, 128>}, {transform_indices = @transform_3, window_bounds = array<i64: 1, 16, 128>}, {transform_indices = @transform_4, window_bounds = array<i64: 1, 16, 128>}]} {
    %c0 = arith.constant 0 : index
    %c0_0 = arith.constant 0 : index
    %c0_1 = arith.constant 0 : index
    %0 = vector.load %arg2[%c0, %c0_0, %c0_1] : memref<1x16x128xf32, #tpu.memory_space<vmem>>, vector<1x16x128xf32>
    %1 = vector.shape_cast %0 : vector<1x16x128xf32> to vector<16x128xf32>
    %c0_2 = arith.constant 0 : index
    %c0_3 = arith.constant 0 : index
    %2 = vector.load %arg3[%c0_2, %c0_3] : memref<128x128xf32, #tpu.memory_space<vmem>>, vector<128x128xf32>
    %cst = arith.constant dense<0.000000e+00> : vector<16x128xf32>
    %3 = tpu.matmul %1, %2, %cst {dimension_numbers = #tpu.dot_dimension_numbers<[1], [0], [0], [1], [0, 0, 1, 1], [], []>} : vector<16x128xf32>, vector<128x128xf32>, vector<16x128xf32> -> vector<16x128xf32>
    %c0_4 = arith.constant 0 : index
    %c0_5 = arith.constant 0 : index
    %4 = vector.load %arg4[%c0_4, %c0_5] : memref<1x128xf32, #tpu.memory_space<vmem>>, vector<1x128xf32>
    %5 = vector.broadcast %4 : vector<1x128xf32> to vector<16x128xf32>
    %6 = arith.addf %3, %5 : vector<16x128xf32>
    %c0_6 = arith.constant 0 : index
    %c0_7 = arith.constant 0 : index
    %c0_8 = arith.constant 0 : index
    %7 = vector.load %arg5[%c0_6, %c0_7, %c0_8] : memref<1x16x128xf32, #tpu.memory_space<vmem>>, vector<1x16x128xf32>
    %8 = vector.shape_cast %7 : vector<1x16x128xf32> to vector<16x128xf32>
    %9 = arith.addf %6, %8 : vector<16x128xf32>
    %c0_9 = arith.constant 0 : index
    %c0_10 = arith.constant 0 : index
    %c0_11 = arith.constant 0 : index
    %10 = vector.load %arg6[%c0_9, %c0_10, %c0_11] : memref<1x16x128xf32, #tpu.memory_space<vmem>>, vector<1x16x128xf32>
    %11 = vector.shape_cast %10 : vector<1x16x128xf32> to vector<16x128xf32>
    %12 = vector.shape_cast %9 : vector<16x128xf32> to vector<1x16x128xf32>
    tpu.vector_store %arg6[%c0_9, %c0_10, %c0_11], %12 {strides = array<i32>} : memref<1x16x128xf32, #tpu.memory_space<vmem>>, vector<1x16x128xf32>,
    return
  }
  func.func @transform_0(%arg0: i32, %arg1: i32) -> (i32, i32, i32) {
    %c0_i32 = arith.constant 0 : i32
    %c0_i32_0 = arith.constant 0 : i32
    return %arg0, %arg1, %c0_i32 : i32, i32, i32
  }
  func.func @transform_1(%arg0: i32, %arg1: i32) -> (i32, i32) {
    %c0_i32 = arith.constant 0 : i32
    %c0_i32_0 = arith.constant 0 : i32
    %c0_i32_1 = arith.constant 0 : i32
    return %c0_i32, %c0_i32_0 : i32, i32
  }
  func.func @transform_2(%arg0: i32, %arg1: i32) -> (i32, i32) {
    %c0_i32 = arith.constant 0 : i32
    %c0_i32_0 = arith.constant 0 : i32
    %c0_i32_1 = arith.constant 0 : i32
    return %c0_i32, %c0_i32_0 : i32, i32
  }
  func.func @transform_3(%arg0: i32, %arg1: i32) -> (i32, i32, i32) {
    %c0_i32 = arith.constant 0 : i32
    %c0_i32_0 = arith.constant 0 : i32
    %c0_i32_1 = arith.constant 0 : i32
    return %c0_i32, %arg1, %c0_i32_0 : i32, i32, i32
  }
  func.func @transform_4(%arg0: i32, %arg1: i32) -> (i32, i32, i32) {
    %c0_i32 = arith.constant 0 : i32
    %c0_i32_0 = arith.constant 0 : i32
    return %arg0, %arg1, %c0_i32 : i32, i32, i32
  }
}

</mosaic_0001>

<llo_original>
// kernel: tpu_custom_call.1
$region0: #{tpu_custom_call.1}
  #allocation0 [shape = 'u32[]', space=smem, size = 0x4, offset = 0x4, fixed_abs, tag = 'smem constant byte address 0x4 - core index']
  #allocation1 [shape = 'u32[144,128]{1,0:T(1,128)}', space=vmem, size = 0x12000, scoped, tag = 'internal scratch']
  %s0 = inlined_call_operand.hbm [shape: f32[2,16,128], index: 0, kind: input, shape index: {}]
  %s1 = inlined_call_operand.hbm [shape: f32[128,128], index: 1, kind: input, shape index: {}]
  %s2 = inlined_call_operand.vmem [shape: f32[1,128], index: 2, kind: input, shape index: {}]
  %s3 = inlined_call_operand.hbm [shape: f32[1,16,128], index: 3, kind: input, shape index: {}]
  %s4 = inlined_call_operand.hbm [shape: f32[2,16,128], index: 4, kind: output, shape index: {}]
  %s5 = sld [smem:[#allocation0]]
  $region61: #{tpu_custom_call.1} parent=0
    _
  %s7 = ssub.s32 1, %s5
  %s8 = scalar_select 0, %s7, %s5
  $region1: #{tpu_custom_call.1} parent=0
    #allocation2 [shape = 'u8[16384]{0}', space=vmem, size = 0x4000, scoped, tag = 'input window, operand 0']
    #allocation3 [shape = 's32[2]{0}', space=sflag, size = 0x8, scoped, tag = 'scoped memory for tpu_custom_call.1']
    #allocation4 [shape = 's32[2]{0}', space=sflag, size = 0x8, scoped, tag = 'scoped memory for tpu_custom_call.1']
    #allocation5 [shape = 'u8[65536]{0}', space=vmem, size = 0x10000, scoped, tag = 'input window, operand 1, single buffered']
    #allocation6 [shape = 's32[1]{0}', space=sflag, size = 0x4, scoped, tag = 'scoped memory for tpu_custom_call.1']
    #allocation7 [shape = 'u8[8192]{0}', space=vmem, size = 0x2000, scoped, tag = 'input window, operand 3, single buffered']
    #allocation8 [shape = 'u8[16384]{0}', space=vmem, size = 0x4000, scoped, tag = 'output window, operand 0']
    %9 = vsyncpa [#allocation3], 0
    %s10 = scalar_lea.sflag [#allocation3], 1
    %11 = vsyncpa %s10, 0
    %12 = vsyncpa [#allocation6], 0
    %13 = vsyncpa [#allocation4], 0
    %s14 = scalar_lea.sflag [#allocation4], 1
    %15 = vsyncpa %s14, 0
    loop: start=0, step=1, limit=4
    $region2: #{tpu_custom_call.1} parent=1 // loop_pre_header
      _
    $region3: #{tpu_custom_call.1} parent=1 // loop_header
      %s17 = sphi 0, %s21
      %p18 = scmp.ge.s32.totalorder %s17, 4
      %s24 = sphi 0, %s36
      %s25 = sphi 0, %s32
      %s26 = sphi 0, %s24
      %s27 = sphi 0, %s25
      %s28 = sphi 0, %s26
      %s29 = sphi 0, %s27
      %s41 = sphi 0, %s43
      %s44 = sphi 0, %s41
      %s45 = sphi 0, %s44
      %s61 = sphi 0, %s45
      %s65 = sphi 0, %s65
      %s67 = sphi 0, %s65
      %s68 = sphi 0, %s67
      %s82 = sphi 0, %s68
      %s86 = sphi 0, %s86
      %s88 = sphi 0, %s86
      %s89 = sphi 0, %s88
      %s103 = sphi 0, %s89
      %s109 = sphi 0, %s111
      %s112 = sphi 0, %s109
      %s113 = sphi 0, %s112
      %s129 = sphi 0, %s113
      %s137 = sphi 0, %s139
      %s140 = sphi 0, %s137
      %s141 = sphi 0, %s140
      %s157 = sphi 0, %s141
    $region4: #{tpu_custom_call.1} parent=1 // loop_header_branch
      %20 = sbr.rel (%p18) target = $region8
    $region5: #{tpu_custom_call.1} parent=1 // loop_body
      %s22 = ssub.s32 %s17, 1
      %s23 = ssub.s32 %s17, 2
      %s30 = sadd.s32 1, %s25
      %p31 = scmp.ge.s32.totalorder %s30, 1
      %s32 = scalar_select %p31, 0, %s30
      %s33 = sadd.s32 1, %s24
      %s34 = scalar_select %p31, %s33, %s24
      %p35 = scmp.ge.s32.totalorder %s34, 2
      %s36 = scalar_select %p35, 0, %s34
      %s37 = ssub.s32 %s24, %s36
      %s38 = ssub.s32 %s25, %s32
      %s39 = sor.u32 %s37, %s38
      %p40 = scmp.eq.s32.totalorder %s39, 0
      %s42 = sadd.s32 %s41, 1
      %s43 = scalar_select %p40, %s41, %s42
      %p46 = pneg %p40
      %p47 = scmp.eq.s32.totalorder %s17, 1
      %p48 = por %p46, %p47
      %p49 = scmp.ne.s32.totalorder %s41, %s44
      %p50 = scmp.eq.s32.totalorder %s17, 0
      %p51 = por %p49, %p50
      %p52 = scmp.ne.s32.totalorder %s41, %s44
      %p53 = scmp.eq.s32.totalorder %s22, 1
      %p54 = por %p52, %p53
      %p55 = scmp.ne.s32.totalorder %s44, %s45
      %p56 = scmp.eq.s32.totalorder %s22, 0
      %p57 = por %p55, %p56
      %p58 = scmp.ne.s32.totalorder %s44, %s45
      %p59 = scmp.eq.s32.totalorder %s23, 1
      %p60 = por %p58, %p59
      %p62 = scmp.ne.s32.totalorder %s45, %s61
      %p63 = scmp.eq.s32.totalorder %s23, 0
      %p64 = por %p62, %p63
      %s66 = sadd.s32 %s65, 1
      %p69 = scmp.eq.s32.totalorder %s17, 1
      %p70 = scmp.ne.s32.totalorder %s65, %s67
      %p71 = scmp.eq.s32.totalorder %s17, 0
      %p72 = por %p70, %p71
      %p73 = scmp.ne.s32.totalorder %s65, %s67
      %p74 = scmp.eq.s32.totalorder %s22, 1
      %p75 = por %p73, %p74
      %p76 = scmp.ne.s32.totalorder %s67, %s68
      %p77 = scmp.eq.s32.totalorder %s22, 0
      %p78 = por %p76, %p77
      %p79 = scmp.ne.s32.totalorder %s67, %s68
      %p80 = scmp.eq.s32.totalorder %s23, 1
      %p81 = por %p79, %p80
      %p83 = scmp.ne.s32.totalorder %s68, %s82
      %p84 = scmp.eq.s32.totalorder %s23, 0
      %p85 = por %p83, %p84
      %s87 = sadd.s32 %s86, 1
      %p90 = scmp.eq.s32.totalorder %s17, 1
      %p91 = scmp.ne.s32.totalorder %s86, %s88
      %p92 = scmp.eq.s32.totalorder %s17, 0
      %p93 = por %p91, %p92
      %p94 = scmp.ne.s32.totalorder %s86, %s88
      %p95 = scmp.eq.s32.totalorder %s22, 1
      %p96 = por %p94, %p95
      %p97 = scmp.ne.s32.totalorder %s88, %s89
      %p98 = scmp.eq.s32.totalorder %s22, 0
      %p99 = por %p97, %p98
      %p100 = scmp.ne.s32.totalorder %s88, %s89
      %p101 = scmp.eq.s32.totalorder %s23, 1
      %p102 = por %p100, %p101
      %p104 = scmp.ne.s32.totalorder %s89, %s103
      %p105 = scmp.eq.s32.totalorder %s23, 0
      %p106 = por %p104, %p105
      %s107 = ssub.s32 %s25, %s32
      %p108 = scmp.eq.s32.totalorder %s107, 0
      %s110 = sadd.s32 %s109, 1
      %s111 = scalar_select %p108, %s109, %s110
      %p114 = pneg %p108
      %p115 = scmp.eq.s32.totalorder %s17, 1
      %p116 = por %p114, %p115
      %p117 = scmp.ne.s32.totalorder %s109, %s112
      %p118 = scmp.eq.s32.totalorder %s17, 0
      %p119 = por %p117, %p118
      %p120 = scmp.ne.s32.totalorder %s109, %s112
      %p121 = scmp.eq.s32.totalorder %s22, 1
      %p122 = por %p120, %p121
      %p123 = scmp.ne.s32.totalorder %s112, %s113
      %p124 = scmp.eq.s32.totalorder %s22, 0
      %p125 = por %p123, %p124
      %p126 = scmp.ne.s32.totalorder %s112, %s113
      %p127 = scmp.eq.s32.totalorder %s23, 1
      %p128 = por %p126, %p127
      %p130 = scmp.ne.s32.totalorder %s113, %s129
      %p131 = scmp.eq.s32.totalorder %s23, 0
      %p132 = por %p130, %p131
      %s133 = ssub.s32 %s24, %s36
      %s134 = ssub.s32 %s25, %s32
      %s135 = sor.u32 %s133, %s134
      %p136 = scmp.eq.s32.totalorder %s135, 0
      %s138 = sadd.s32 %s137, 1
      %s139 = scalar_select %p136, %s137, %s138
      %p142 = pneg %p136
      %p143 = scmp.eq.s32.totalorder %s17, 1
      %p144 = por %p142, %p143
      %p145 = scmp.ne.s32.totalorder %s137, %s140
      %p146 = scmp.eq.s32.totalorder %s17, 0
      %p147 = por %p145, %p146
      %p148 = scmp.ne.s32.totalorder %s137, %s140
      %p149 = scmp.eq.s32.totalorder %s22, 1
      %p150 = por %p148, %p149
      %p151 = scmp.ne.s32.totalorder %s140, %s141
      %p152 = scmp.eq.s32.totalorder %s22, 0
      %p153 = por %p151, %p152
      %p154 = scmp.ne.s32.totalorder %s140, %s141
      %p155 = scmp.eq.s32.totalorder %s23, 1
      %p156 = por %p154, %p155
      %p158 = scmp.ne.s32.totalorder %s141, %s157
      %p159 = scmp.eq.s32.totalorder %s23, 0
      %p160 = por %p158, %p159
      %p161 = scmp.le.s32.totalorder 1, %s17
      %p162 = scmp.lt.s32.totalorder %s17, 3
      %p163 = pnand %p161, %p162
      %p164 = pneg %p163
      // Predicated region
      $region9: #{tpu_custom_call.1} parent=5 // pred_check
        _
      $region10: #{tpu_custom_call.1} parent=5 // pred_check_branch
        %166 = sbr.rel (%p163) target = $region12
      $region11: #{tpu_custom_call.1} parent=5 // pred_region
        %s167 = ssub.s32 %s17, 1
        // Predicated region
        $region13: #{tpu_custom_call.1} parent=11 // pred_check
          %p168 = pneg %p78
        $region14: #{tpu_custom_call.1} parent=11 // pred_check_branch
          %170 = sbr.rel (%p168) target = $region16
        $region15: #{tpu_custom_call.1} parent=11 // pred_region
          %s172 = ssub.s32 2048, 2048
          %173 = vsyncadd [#allocation6], %s172
          %s174 = sshll.u32 [#allocation5], 4
          %s175 = int_to_ptr.vmem [resolvable:$true] %s174
          %180 = dma.hbm_to_vmem [thread:$0]  %s1, 2048, %s175, [#allocation6], 128, 128, 8
        $region16: #{tpu_custom_call.1} parent=11 // pred_fallthru
          _
        // Predicated region
        $region17: #{tpu_custom_call.1} parent=11 // pred_check
          %p181 = pneg %p99
        $region18: #{tpu_custom_call.1} parent=11 // pred_check_branch
          %183 = sbr.rel (%p181) target = $region20
        $region19: #{tpu_custom_call.1} parent=11 // pred_region
          _
        $region20: #{tpu_custom_call.1} parent=11 // pred_fallthru
          _
        // Predicated region
        $region21: #{tpu_custom_call.1} parent=11 // pred_check
          %p184 = pneg %p125
        $region22: #{tpu_custom_call.1} parent=11 // pred_check_branch
          %186 = sbr.rel (%p184) target = $region24
        $region23: #{tpu_custom_call.1} parent=11 // pred_region
          %s187 = smul.u32 2, %s27
          %s189 = ssub.s32 256, 256
          %190 = vsyncadd [#allocation6], %s189
          %s191 = smul.addr %s187, 128
          %s192 = scalar_lea.hbm %s3, %s191
          %s193 = sshll.u32 [#allocation7], 4
          %s194 = int_to_ptr.vmem [resolvable:$true] %s193
          %199 = dma.hbm_to_vmem [thread:$0]  %s192, 256, %s194, [#allocation6], 128, 128, 8
        $region24: #{tpu_custom_call.1} parent=11 // pred_fallthru
          _
      $region12: #{tpu_custom_call.1} parent=5 // pred_fallthru
        _
      %p200 = scmp.lt.s32.totalorder %s17, 2
      // Predicated region
      $region25: #{tpu_custom_call.1} parent=5 // pred_check
        %p201 = pneg %p200
      $region26: #{tpu_custom_call.1} parent=5 // pred_check_branch
        %203 = sbr.rel (%p201) target = $region28
      $region27: #{tpu_custom_call.1} parent=5 // pred_region
        // Predicated region
        $region29: #{tpu_custom_call.1} parent=27 // pred_check
          %p204 = pneg %p51
        $region30: #{tpu_custom_call.1} parent=27 // pred_check_branch
          %206 = sbr.rel (%p204) target = $region32
        $region31: #{tpu_custom_call.1} parent=27 // pred_region
          %s207 = sand.u32 %s41, 1
          %s208 = scalar_lea.sflag [#allocation3], %s207
          %s209 = sand.u32 %s41, 1
          %s210 = smul.addr %s209, 16
          %s211 = scalar_lea.vmem [#allocation2], %s210
          %s212 = smul.u32 2, %s25
          %s214 = ssub.s32 256, 256
          %215 = vsyncadd %s208, %s214
          %s216 = smul.addr %s24, 2
          %s217 = sadd.s32 %s212, %s216
          %s218 = smul.addr %s217, 128
          %s219 = scalar_lea.hbm %s0, %s218
          %s220 = sshll.u32 %s211, 4
          %s221 = int_to_ptr.vmem [resolvable:$true] %s220
          %226 = dma.hbm_to_vmem [thread:$0]  %s219, 256, %s221, %s208, 128, 128, 8
        $region32: #{tpu_custom_call.1} parent=27 // pred_fallthru
          _
      $region28: #{tpu_custom_call.1} parent=5 // pred_fallthru
        _
      %p227 = scmp.le.s32.totalorder 1, %s17
      %p228 = scmp.lt.s32.totalorder %s17, 3
      %p229 = pnand %p227, %p228
      %p230 = pneg %p229
      // Predicated region
      $region33: #{tpu_custom_call.1} parent=5 // pred_check
        _
      $region34: #{tpu_custom_call.1} parent=5 // pred_check_branch
        %232 = sbr.rel (%p229) target = $region36
      $region35: #{tpu_custom_call.1} parent=5 // pred_region
        %s233 = ssub.s32 %s17, 1
        %s234 = sand.u32 %s44, 1
        %s235 = scalar_lea.sflag [#allocation3], %s234
        %s236 = sand.u32 %s44, 1
        %s237 = smul.addr %s236, 16
        %s238 = scalar_lea.vmem [#allocation2], %s237
        // Predicated region
        $region37: #{tpu_custom_call.1} parent=35 // pred_check
          %p239 = pneg %p57
        $region38: #{tpu_custom_call.1} parent=35 // pred_check_branch
          %241 = sbr.rel (%p239) target = $region40
        $region39: #{tpu_custom_call.1} parent=35 // pred_region
          %242 = dma.done %s235, 256
        $region40: #{tpu_custom_call.1} parent=35 // pred_fallthru
          _
        // Predicated region
        $region41: #{tpu_custom_call.1} parent=35 // pred_check
          %p243 = pneg %p78
        $region42: #{tpu_custom_call.1} parent=35 // pred_check_branch
          %245 = sbr.rel (%p243) target = $region44
        $region43: #{tpu_custom_call.1} parent=35 // pred_region
          %246 = dma.done [#allocation6], 2048
        $region44: #{tpu_custom_call.1} parent=35 // pred_fallthru
          _
        // Predicated region
        $region45: #{tpu_custom_call.1} parent=35 // pred_check
          %p247 = pneg %p125
        $region46: #{tpu_custom_call.1} parent=35 // pred_check_branch
          %249 = sbr.rel (%p247) target = $region48
        $region47: #{tpu_custom_call.1} parent=35 // pred_region
          %250 = dma.done [#allocation6], 256
        $region48: #{tpu_custom_call.1} parent=35 // pred_fallthru
          _
        %s251 = sand.u32 %s44, 1
        %s252 = scalar_lea.sflag [#allocation3], %s251
        %s253 = sand.u32 %s44, 1
        %s254 = smul.addr %s253, 16
        %s255 = scalar_lea.vmem [#allocation2], %s254
        %p256 = pneg %p57
        %p257 = pneg %p54
        %p258 = pneg %p78
        %p259 = pneg %p75
        %p260 = pneg %p99
        %p261 = pneg %p96
        %p262 = pneg %p125
        %p263 = pneg %p122
        %p264 = pneg %p153
        %p265 = pneg %p150
        %s266 = sand.u32 %s140, 1
        %s267 = scalar_lea.sflag [#allocation4], %s266
        %s268 = sand.u32 %s140, 1
        %s269 = smul.addr %s268, 16
        %s270 = scalar_lea.vmem [#allocation8], %s269
        %s271 = smul.u32 2, %s27
        %s272 = smul.u32 2, %s27
        %s273 = smul.u32 2, %s27
        %v274 = vld [vmem:[%s238] sm:$0xff]
        %v275 = vld [vmem:[%s238 + $0x8] sm:$0xff]
        %v276 = vld [vmem:[#allocation5] sm:$0xff]
        %v277 = vld [vmem:[#allocation5 + $0x8] sm:$0xff]
        %v278 = vld [vmem:[#allocation5 + $0x10] sm:$0xff]
        %v279 = vld [vmem:[#allocation5 + $0x18] sm:$0xff]
        %v280 = vld [vmem:[#allocation5 + $0x20] sm:$0xff]
        %v281 = vld [vmem:[#allocation5 + $0x28] sm:$0xff]
        %v282 = vld [vmem:[#allocation5 + $0x30] sm:$0xff]
        %v283 = vld [vmem:[#allocation5 + $0x38] sm:$0xff]
        %v284 = vld [vmem:[#allocation5 + $0x40] sm:$0xff]
        %v285 = vld [vmem:[#allocation5 + $0x48] sm:$0xff]
        %v286 = vld [vmem:[#allocation5 + $0x50] sm:$0xff]
        %v287 = vld [vmem:[#allocation5 + $0x58] sm:$0xff]
        %v288 = vld [vmem:[#allocation5 + $0x60] sm:$0xff]
        %v289 = vld [vmem:[#allocation5 + $0x68] sm:$0xff]
        %v290 = vld [vmem:[#allocation5 + $0x70] sm:$0xff]
        %v291 = vld [vmem:[#allocation5 + $0x78] sm:$0xff]
        %v292 = vld [vmem:[%s2] sm:$0x1]
        %v294 = vlaneseq
        %v295 = vshrl.u32 %v294, 7
        %v296 = vsub.s32 0, %v295
        %v297 = vrot.slane %v292, %v296
        %299 = vmatprep.subr.mxu0 0.0
        %300 = vmatpush1.msra.mxu0 %v291
        %301 = vmatprep.subr.mxu0 0.0
        %302 = vmatpush1.msra.mxu0 %v290
        %303 = vmatprep.subr.mxu0 0.0
        %304 = vmatpush1.msra.mxu0 %v289
        %305 = vmatprep.subr.mxu0 0.0
        %306 = vmatpush1.msra.mxu0 %v288
        %307 = vmatprep.subr.mxu0 0.0
        %308 = vmatpush1.msra.mxu0 %v287
        %309 = vmatprep.subr.mxu0 0.0
        %310 = vmatpush1.msra.mxu0 %v286
        %311 = vmatprep.subr.mxu0 0.0
        %312 = vmatpush1.msra.mxu0 %v285
        %313 = vmatprep.subr.mxu0 0.0
        %314 = vmatpush1.msra.mxu0 %v284
        %315 = vmatprep.subr.mxu0 0.0
        %316 = vmatpush1.msra.mxu0 %v283
        %317 = vmatprep.subr.mxu0 0.0
        %318 = vmatpush1.msra.mxu0 %v282
        %319 = vmatprep.subr.mxu0 0.0
        %320 = vmatpush1.msra.mxu0 %v281
        %321 = vmatprep.subr.mxu0 0.0
        %322 = vmatpush1.msra.mxu0 %v280
        %323 = vmatprep.subr.mxu0 0.0
        %324 = vmatpush1.msra.mxu0 %v279
        %325 = vmatprep.subr.mxu0 0.0
        %326 = vmatpush1.msra.mxu0 %v278
        %327 = vmatprep.subr.mxu0 0.0
        %328 = vmatpush1.msra.mxu0 %v277
        %329 = vmatprep.subr.mxu0 0.0
        %330 = vmatpush1.msra.mxu0 %v276
        %331 = vmatprep.subr.mxu0 0.0
        %332 = vmatpush2.msra.mxu0 0.0
        %333 = vmatprep.subr.mxu0 0.0
        %334 = vmatpush2.msra.mxu0 0.0
        %335 = vmatprep.subr.mxu0 0.0
        %336 = vmatpush2.msra.mxu0 0.0
        %337 = vmatprep.subr.mxu0 0.0
        %338 = vmatpush2.msra.mxu0 0.0
        %339 = vmatprep.subr.mxu0 0.0
        %340 = vmatpush2.msra.mxu0 0.0
        %341 = vmatprep.subr.mxu0 0.0
        %342 = vmatpush2.msra.mxu0 0.0
        %343 = vmatprep.subr.mxu0 0.0
        %344 = vmatpush2.msra.mxu0 0.0
        %345 = vmatprep.subr.mxu0 0.0
        %346 = vmatpush2.msra.mxu0 0.0
        %347 = vmatprep.subr.mxu0 0.0
        %348 = vmatpush2.msra.mxu0 0.0
        %349 = vmatprep.subr.mxu0 0.0
        %350 = vmatpush2.msra.mxu0 0.0
        %351 = vmatprep.subr.mxu0 0.0
        %352 = vmatpush2.msra.mxu0 0.0
        %353 = vmatprep.subr.mxu0 0.0
        %354 = vmatpush2.msra.mxu0 0.0
        %355 = vmatprep.subr.mxu0 0.0
        %356 = vmatpush2.msra.mxu0 0.0
        %357 = vmatprep.subr.mxu0 0.0
        %358 = vmatpush2.msra.mxu0 0.0
        %359 = vmatprep.subr.mxu0 0.0
        %360 = vmatpush2.msra.mxu0 0.0
        %361 = vmatprep.subr.mxu0 0.0
        %362 = vmatpush2.msra.mxu0 0.0
        %363 = vmatprep.mubr.f32.mxu0 0.0
        %364 = vmatmul.mubr.f32.gmra.mxu0 %v274
        %v365 = vpop.f32.mrf.mxu0
        %v366 = vadd.f32 %v297, %v365
        %v367 = vpop.f32.mrf.mxu0
        %368 = vmatprep.mubr.f32.mxu0 0.0
        %369 = vmatmul.mubr.f32.gmra.mxu0 %v275
        %v370 = vpop.f32.mrf.mxu0
        %v371 = vadd.f32 %v297, %v370
        %v372 = vpop.f32.mrf.mxu0
        %373 = vdwg.mxu0
        %v374 = vld [vmem:[#allocation7] sm:$0xff]
        %v375 = vld [vmem:[#allocation7 + $0x8] sm:$0xff]
        %v376 = vadd.f32 %v366, %v374
        %v377 = vadd.f32 %v371, %v375
        %378 = vst [vmem:[%s270] sm:$0xff] %v376
        %379 = vst [vmem:[%s270 + $0x8] sm:$0xff] %v377
        %s380 = sand.u32 %s140, 1
        %s381 = scalar_lea.sflag [#allocation4], %s380
        %s382 = sand.u32 %s140, 1
        %s383 = smul.addr %s382, 16
        %s384 = scalar_lea.vmem [#allocation8], %s383
        // Predicated region
        $region49: #{tpu_custom_call.1} parent=35 // pred_check
          %p385 = pneg %p150
        $region50: #{tpu_custom_call.1} parent=35 // pred_check_branch
          %387 = sbr.rel (%p385) target = $region52
        $region51: #{tpu_custom_call.1} parent=35 // pred_region
          %s388 = smul.u32 2, %s27
          %s390 = ssub.s32 256, 256
          %391 = vsyncadd %s381, %s390
          %s392 = smul.addr %s26, 2
          %s393 = sadd.s32 %s388, %s392
          %s394 = smul.addr %s393, 128
          %s395 = scalar_lea.hbm %s4, %s394
          %s396 = sshll.u32 %s384, 4
          %s397 = int_to_ptr.vmem [resolvable:$true] %s396
          %402 = dma.vmem_to_hbm [thread:$0]  %s397, 256, %s395, %s381, 128, 128, 8
        $region52: #{tpu_custom_call.1} parent=35 // pred_fallthru
          _
      $region36: #{tpu_custom_call.1} parent=5 // pred_fallthru
        _
      %p403 = scmp.le.s32.totalorder 2, %s17
      // Predicated region
      $region53: #{tpu_custom_call.1} parent=5 // pred_check
        %p404 = pneg %p403
      $region54: #{tpu_custom_call.1} parent=5 // pred_check_branch
        %406 = sbr.rel (%p404) target = $region56
      $region55: #{tpu_custom_call.1} parent=5 // pred_region
        %s407 = ssub.s32 %s17, 2
        // Predicated region
        $region57: #{tpu_custom_call.1} parent=55 // pred_check
          %p408 = pneg %p156
        $region58: #{tpu_custom_call.1} parent=55 // pred_check_branch
          %410 = sbr.rel (%p408) target = $region60
        $region59: #{tpu_custom_call.1} parent=55 // pred_region
          %s411 = sand.u32 %s141, 1
          %s412 = scalar_lea.sflag [#allocation4], %s411
          %s413 = sand.u32 %s141, 1
          %s414 = smul.addr %s413, 16
          %s415 = scalar_lea.vmem [#allocation8], %s414
          %416 = dma.done %s412, 256
        $region60: #{tpu_custom_call.1} parent=55 // pred_fallthru
          _
      $region56: #{tpu_custom_call.1} parent=5 // pred_fallthru
        _
    $region6: #{tpu_custom_call.1} parent=1 // loop_footer
      %s21 = sadd.s32 1, %s17
    $region7: #{tpu_custom_call.1} parent=1 // loop_footer_branch
      %16 = sbr.rel target = $region3
    $region8: #{tpu_custom_call.1} parent=1 // loop_exit
      _
    %417 = vsyncpa [#allocation3], 1
    %s418 = scalar_lea.sflag [#allocation3], 1
    %419 = vsyncpa %s418, 1
    %420 = vsyncpa [#allocation6], 1
    %421 = vsyncpa [#allocation4], 1
    %s422 = scalar_lea.sflag [#allocation4], 1
    %423 = vsyncpa %s422, 1

</llo_original>
